<compile_context>
chip_gen: v7x
topology: tpu7x:2x2x1
jax: 0.10.0
libtpu: 0.0.40
codegen_flags: <defaults>
</compile_context>

<pallas_src>
import math

import jax
import jax.numpy as jnp
from jax.experimental import pallas as pl
from jax.experimental.pallas import tpu as pltpu


def _standardize_kernel(h_ref, mean_ref, inv_std_ref, out_ref):
    # h_ref:       (tm, tl) tile of (repacked) node features, input dtype
    # mean_ref:    (1, tl)  per-feature mean  (f32, broadcast over rows, VMEM-resident)
    # inv_std_ref: (1, tl)  per-feature 1/std (f32, broadcast over rows, VMEM-resident)
    h = h_ref[...].astype(jnp.float32)
    out_ref[...] = ((h - mean_ref[...]) * inv_std_ref[...]).astype(out_ref.dtype)


def _default_block_bytes():
    """Per-generation block byte budget for this mem-bound streaming kernel."""
    try:
        vmem = int(pltpu.get_tpu_info().vmem_capacity_bytes)
    except Exception:
        vmem = 128 * 1024 * 1024
    # v7x: 64 MiB VMEM but ~3.2 TB/s HBM -> larger blocks to amortize the ~0.35us/step
    # pipeline overhead; v5e/v6e (128 MiB VMEM, 0.8-1.4 TB/s) are on-roofline at 2 MiB.
    return 3 * 1024 * 1024 if vmem <= 64 * 1024 * 1024 else 2 * 1024 * 1024


def standardize(h, mean, std, *, target_block_bytes=None, min_pallas_bytes=64 * 1024):
    """Apply (h - mean) / std with a Pallas TPU kernel.

    h:    [N, F] float node features
    mean: [F]    per-feature mean
    std:  [F]    per-feature std
    """
    N, F = h.shape
    dtype = h.dtype
    itemsize = dtype.itemsize

    # Reciprocal in float32 (wrapper-side, tiny [F] vector) -> accurate for bf16 inputs.
    mean_f32 = mean.astype(jnp.float32).reshape(1, F)
    inv_std_f32 = (1.0 / std.astype(jnp.float32)).reshape(1, F)

    # Tiny graphs: fixed pallas_call + pipeline prologue dominates; XLA fusion is faster.
    if N * F * itemsize <= min_pallas_bytes:
        return ((h.astype(jnp.float32) - mean_f32) * inv_std_f32).astype(dtype)

    # ---- lane-dense repack ---------------------------------------------------
    # View the row-major [N, F] stream as [M, L] with L = lcm(F, 128): every vld/vst
    # uses all 128 lanes (unmasked stores).  mean / inv_std tile cleanly since L % F == 0.
    repacked = False
    ragged = False
    if F % 128 != 0:
        factor = 128 // math.gcd(F, 128)
        L = F * factor                      # = lcm(F, 128), a multiple of 128
        if L * itemsize <= 64 * 1024:       # keep one repacked row reasonable
            total = N * F
            M = pl.cdiv(total, L)
            if M * L != total:
                # Ragged: pad the flat stream first, stay on the lane-dense path.
                ragged = True
                flat = jnp.pad(h.reshape(-1), (0, M * L - total))
            else:
                flat = h.reshape(-1)        # free (metadata only)
            h2 = flat.reshape(M, L)
            mean2 = jnp.tile(mean_f32, (1, factor))
            inv2 = jnp.tile(inv_std_f32, (1, factor))
            repacked = True
    if not repacked:
        M, L = N, F
        h2, mean2, inv2 = h, mean_f32, inv_std_f32

    # ---- tile sizing from a per-generation VMEM byte budget -------------------
    if target_block_bytes is None:
        target_block_bytes = _default_block_bytes()
    sub = {4: 8, 2: 16, 1: 32}.get(itemsize, 8)     # sublane row multiple per dtype

    # Column tile: keep full (lane-dense) rows unless a single sublane-group of rows
    # would blow the budget (very wide F with F % 128 == 0).
    if L % 128 == 0 and L * sub * itemsize > target_block_bytes:
        tl = max(128, (target_block_bytes // (sub * itemsize)) // 128 * 128)
        tl = min(tl, L)
    else:
        tl = L

    # Row tile: fill the byte budget, round to the sublane multiple, cap near M/2 so the
    # parallel row axis always gives both v7x TensorCores work.
    tm = max(sub, (target_block_bytes // (tl * itemsize)) // sub * sub)
    if M > 2 * sub:
        tm = min(tm, max(sub, ((M + 1) // 2) // sub * sub))
    tm = min(tm, max(sub, pl.cdiv(M, sub) * sub))

    # Partial boundary blocks handle ragged M / L: no wrapper-side pad or slice needed.
    grid = (pl.cdiv(M, tm), pl.cdiv(L, tl))

    block_bytes = tm * tl * itemsize
    vmem_limit = int(max(16 << 20, min(4 * block_bytes + 16 * tl + (4 << 20), 96 << 20)))

    out2 = pl.pallas_call(
        _standardize_kernel,
        out_shape=jax.ShapeDtypeStruct((M, L), dtype),
        grid_spec=pl.GridSpec(
            grid=grid,
            in_specs=[
                pl.BlockSpec((tm, tl), lambda i, j: (i, j)),   # node-feature tile
                pl.BlockSpec((1, tl), lambda i, j: (0, j)),    # mean (resident, f32)
                pl.BlockSpec((1, tl), lambda i, j: (0, j)),    # inv_std (resident, f32)
            ],
            out_specs=pl.BlockSpec((tm, tl), lambda i, j: (i, j)),
        ),
        compiler_params=pltpu.CompilerParams(
            dimension_semantics=("parallel", "parallel"),
            vmem_limit_bytes=vmem_limit,
        ),
    )(h2, mean2, inv2)

    if repacked:
        flat_out = out2.reshape(-1)
        if ragged:
            flat_out = flat_out[: N * F]
        return flat_out.reshape(N, F)
    return out2


if __name__ == "__main__":
    key = jax.random.PRNGKey(0)
    k_h, k_m, k_s, k_h2 = jax.random.split(key, 4)

    def reference(x, mu, sd):
        return ((x.astype(jnp.float32) - mu.astype(jnp.float32)[None, :])
                / sd.astype(jnp.float32)[None, :])

    # Case 1: f32 atom_features, lane-dense repack with exact divisibility (no pad/slice).
    N, F = 520, 32
    h = jax.random.normal(k_h, (N, F), dtype=jnp.float32) * 3.0 + 1.5
    mean = jax.random.normal(k_m, (F,), dtype=jnp.float32)
    std = jax.random.uniform(k_s, (F,), dtype=jnp.float32, minval=0.5, maxval=2.0)
    out = jax.block_until_ready(standardize(h, mean, std))
    assert out.shape == h.shape and out.dtype == h.dtype
    assert jnp.allclose(out, reference(h, mean, std), rtol=1e-5, atol=1e-5)

    # Case 2: ragged node count (N*F not a multiple of 128) -> pad-first, still lane-dense.
    h_r = h[:517]
    out_r = jax.block_until_ready(standardize(h_r, mean, std))
    assert out_r.shape == h_r.shape
    assert jnp.allclose(out_r, reference(h_r, mean, std), rtol=1e-5, atol=1e-5)

    # Case 3: bf16 features, F=48 -> lane-dense via L = lcm(48, 128) = 384; f32 reciprocal.
    Nb, Fb = 1040, 48
    hb = (jax.random.normal(k_h2, (Nb, Fb), dtype=jnp.float32) * 2.0 + 0.5).astype(jnp.bfloat16)
    mean_b = jax.random.normal(k_m, (Fb,), dtype=jnp.float32).astype(jnp.bfloat16)
    std_b = jax.random.uniform(k_s, (Fb,), dtype=jnp.float32,
                               minval=0.5, maxval=2.0).astype(jnp.bfloat16)
    out_b = jax.block_until_ready(standardize(hb, mean_b, std_b))
    assert out_b.shape == hb.shape and out_b.dtype == jnp.bfloat16
    assert jnp.allclose(out_b.astype(jnp.float32), reference(hb, mean_b, std_b),
                        rtol=2e-2, atol=2e-2)

    # Case 4: tiny graph -> XLA fast path (pallas_call overhead not worth it).
    out_t = jax.block_until_ready(standardize(h[:64], mean, std))
    assert jnp.allclose(out_t, reference(h[:64], mean, std), rtol=1e-5, atol=1e-5)

    print("KERNEL_OK")
</pallas_src>

<mosaic_0001>
module attributes {stable_mosaic.version = 11 : i64} {
  func.func @_standardize_kernel(%arg0: i32, %arg1: i32, %arg2: memref<64x128xf32, #tpu.memory_space<vmem>>, %arg3: memref<1x128xf32, #tpu.memory_space<vmem>>, %arg4: memref<1x128xf32, #tpu.memory_space<vmem>>, %arg5: memref<64x128xf32, #tpu.memory_space<vmem>>) attributes {dimension_semantics = [#tpu.dimension_semantics<parallel>, #tpu.dimension_semantics<parallel>], iteration_bounds = array<i64: 3, 1>, scalar_prefetch = 0 : i64, scratch_operands = 0 : i64, tpu.core_type = #tpu.core_type<tc>, window_params = [{transform_indices = @transform_0, window_bounds = array<i64: 64, 128>}, {transform_indices = @transform_1, window_bounds = array<i64: 1, 128>}, {transform_indices = @transform_2, window_bounds = array<i64: 1, 128>}, {transform_indices = @transform_3, window_bounds = array<i64: 64, 128>}]} {
    %c0 = arith.constant 0 : index
    %c0_0 = arith.constant 0 : index
    %0 = vector.load %arg2[%c0, %c0_0] : memref<64x128xf32, #tpu.memory_space<vmem>>, vector<64x128xf32>
    %c0_1 = arith.constant 0 : index
    %c0_2 = arith.constant 0 : index
    %1 = vector.load %arg3[%c0_1, %c0_2] : memref<1x128xf32, #tpu.memory_space<vmem>>, vector<1x128xf32>
    %2 = vector.broadcast %1 : vector<1x128xf32> to vector<64x128xf32>
    %3 = arith.subf %0, %2 : vector<64x128xf32>
    %c0_3 = arith.constant 0 : index
    %c0_4 = arith.constant 0 : index
    %4 = vector.load %arg4[%c0_3, %c0_4] : memref<1x128xf32, #tpu.memory_space<vmem>>, vector<1x128xf32>
    %5 = vector.broadcast %4 : vector<1x128xf32> to vector<64x128xf32>
    %6 = arith.mulf %3, %5 : vector<64x128xf32>
    %c0_5 = arith.constant 0 : index
    %c0_6 = arith.constant 0 : index
    %7 = vector.load %arg5[%c0_5, %c0_6] : memref<64x128xf32, #tpu.memory_space<vmem>>, vector<64x128xf32>
    tpu.vector_store %arg5[%c0_5, %c0_6], %6 {strides = array<i32>} : memref<64x128xf32, #tpu.memory_space<vmem>>, vector<64x128xf32>,
    return
  }
  func.func @transform_0(%arg0: i32, %arg1: i32) -> (i32, i32) {
    %c0_i32 = arith.constant 0 : i32
    return %arg0, %arg1 : i32, i32
  }
  func.func @transform_1(%arg0: i32, %arg1: i32) -> (i32, i32) {
    %c0_i32 = arith.constant 0 : i32
    %c0_i32_0 = arith.constant 0 : i32
    return %c0_i32, %arg1 : i32, i32
  }
  func.func @transform_2(%arg0: i32, %arg1: i32) -> (i32, i32) {
    %c0_i32 = arith.constant 0 : i32
    %c0_i32_0 = arith.constant 0 : i32
    return %c0_i32, %arg1 : i32, i32
  }
  func.func @transform_3(%arg0: i32, %arg1: i32) -> (i32, i32) {
    %c0_i32 = arith.constant 0 : i32
    return %arg0, %arg1 : i32, i32
  }
}

</mosaic_0001>

<llo_original>
// kernel: tpu_custom_call.1
$region0: #{tpu_custom_call.1}
  #allocation0 [shape = 'u32[]', space=smem, size = 0x4, offset = 0x4, fixed_abs, tag = 'smem constant byte address 0x4 - core index']
  #allocation1 [shape = 'u32[144,128]{1,0:T(1,128)}', space=vmem, size = 0x12000, scoped, tag = 'internal scratch']
  %s0 = inlined_call_operand.hbm [shape: f32[130,128], index: 0, kind: input, shape index: {}]
  %s1 = inlined_call_operand.vmem [shape: f32[1,128], index: 1, kind: input, shape index: {}]
  %s2 = inlined_call_operand.vmem [shape: f32[1,128], index: 2, kind: input, shape index: {}]
  %s3 = inlined_call_operand.hbm [shape: f32[130,128], index: 3, kind: output, shape index: {}]
  %s4 = sld [smem:[#allocation0]]
  $region49: #{tpu_custom_call.1} parent=0
    _
  %s6 = ssub.s32 1, %s4
  %s7 = scalar_select 0, %s6, %s4
  $region1: #{tpu_custom_call.1} parent=0
    #allocation2 [shape = 'u8[65536]{0}', space=vmem, size = 0x10000, scoped, tag = 'input window, operand 0']
    #allocation3 [shape = 's32[2]{0}', space=sflag, size = 0x8, scoped, tag = 'scoped memory for tpu_custom_call.1']
    #allocation4 [shape = 's32[2]{0}', space=sflag, size = 0x8, scoped, tag = 'scoped memory for tpu_custom_call.1']
    #allocation5 [shape = 'u8[65536]{0}', space=vmem, size = 0x10000, scoped, tag = 'output window, operand 0']
    %8 = vsyncpa [#allocation3], 0
    %s9 = scalar_lea.sflag [#allocation3], 1
    %10 = vsyncpa %s9, 0
    %11 = vsyncpa [#allocation4], 0
    %s12 = scalar_lea.sflag [#allocation4], 1
    %13 = vsyncpa %s12, 0
    loop: start=0, step=1, limit=5
    $region2: #{tpu_custom_call.1} parent=1 // loop_pre_header
      _
    $region3: #{tpu_custom_call.1} parent=1 // loop_header
      %s15 = sphi 0, %s19
      %p16 = scmp.ge.s32.totalorder %s15, 5
      %s22 = sphi 0, %s34
      %s23 = sphi 0, %s30
      %s24 = sphi 0, %s22
      %s25 = sphi 0, %s23
      %s26 = sphi 0, %s24
      %s27 = sphi 0, %s25
      %s39 = sphi 0, %s41
      %s42 = sphi 0, %s39
      %s43 = sphi 0, %s42
      %s59 = sphi 0, %s43
      %s65 = sphi 0, %s67
      %s68 = sphi 0, %s65
      %s69 = sphi 0, %s68
      %s85 = sphi 0, %s69
      %s91 = sphi 0, %s93
      %s94 = sphi 0, %s91
      %s95 = sphi 0, %s94
      %s111 = sphi 0, %s95
      %s119 = sphi 0, %s121
      %s122 = sphi 0, %s119
      %s123 = sphi 0, %s122
      %s139 = sphi 0, %s123
    $region4: #{tpu_custom_call.1} parent=1 // loop_header_branch
      %18 = sbr.rel (%p16) target = $region8
    $region5: #{tpu_custom_call.1} parent=1 // loop_body
      %s20 = ssub.s32 %s15, 1
      %s21 = ssub.s32 %s15, 2
      %s28 = sadd.s32 1, %s23
      %p29 = scmp.ge.s32.totalorder %s28, 1
      %s30 = scalar_select %p29, 0, %s28
      %s31 = sadd.s32 1, %s22
      %s32 = scalar_select %p29, %s31, %s22
      %p33 = scmp.ge.s32.totalorder %s32, 3
      %s34 = scalar_select %p33, 0, %s32
      %s35 = ssub.s32 %s22, %s34
      %s36 = ssub.s32 %s23, %s30
      %s37 = sor.u32 %s35, %s36
      %p38 = scmp.eq.s32.totalorder %s37, 0
      %s40 = sadd.s32 %s39, 1
      %s41 = scalar_select %p38, %s39, %s40
      %p44 = pneg %p38
      %p45 = scmp.eq.s32.totalorder %s15, 2
      %p46 = por %p44, %p45
      %p47 = scmp.ne.s32.totalorder %s39, %s42
      %p48 = scmp.eq.s32.totalorder %s15, 0
      %p49 = por %p47, %p48
      %p50 = scmp.ne.s32.totalorder %s39, %s42
      %p51 = scmp.eq.s32.totalorder %s20, 2
      %p52 = por %p50, %p51
      %p53 = scmp.ne.s32.totalorder %s42, %s43
      %p54 = scmp.eq.s32.totalorder %s20, 0
      %p55 = por %p53, %p54
      %p56 = scmp.ne.s32.totalorder %s42, %s43
      %p57 = scmp.eq.s32.totalorder %s21, 2
      %p58 = por %p56, %p57
      %p60 = scmp.ne.s32.totalorder %s43, %s59
      %p61 = scmp.eq.s32.totalorder %s21, 0
      %p62 = por %p60, %p61
      %s63 = ssub.s32 %s23, %s30
      %p64 = scmp.eq.s32.totalorder %s63, 0
      %s66 = sadd.s32 %s65, 1
      %s67 = scalar_select %p64, %s65, %s66
      %p70 = pneg %p64
      %p71 = scmp.eq.s32.totalorder %s15, 2
      %p72 = por %p70, %p71
      %p73 = scmp.ne.s32.totalorder %s65, %s68
      %p74 = scmp.eq.s32.totalorder %s15, 0
      %p75 = por %p73, %p74
      %p76 = scmp.ne.s32.totalorder %s65, %s68
      %p77 = scmp.eq.s32.totalorder %s20, 2
      %p78 = por %p76, %p77
      %p79 = scmp.ne.s32.totalorder %s68, %s69
      %p80 = scmp.eq.s32.totalorder %s20, 0
      %p81 = por %p79, %p80
      %p82 = scmp.ne.s32.totalorder %s68, %s69
      %p83 = scmp.eq.s32.totalorder %s21, 2
      %p84 = por %p82, %p83
      %p86 = scmp.ne.s32.totalorder %s69, %s85
      %p87 = scmp.eq.s32.totalorder %s21, 0
      %p88 = por %p86, %p87
      %s89 = ssub.s32 %s23, %s30
      %p90 = scmp.eq.s32.totalorder %s89, 0
      %s92 = sadd.s32 %s91, 1
      %s93 = scalar_select %p90, %s91, %s92
      %p96 = pneg %p90
      %p97 = scmp.eq.s32.totalorder %s15, 2
      %p98 = por %p96, %p97
      %p99 = scmp.ne.s32.totalorder %s91, %s94
      %p100 = scmp.eq.s32.totalorder %s15, 0
      %p101 = por %p99, %p100
      %p102 = scmp.ne.s32.totalorder %s91, %s94
      %p103 = scmp.eq.s32.totalorder %s20, 2
      %p104 = por %p102, %p103
      %p105 = scmp.ne.s32.totalorder %s94, %s95
      %p106 = scmp.eq.s32.totalorder %s20, 0
      %p107 = por %p105, %p106
      %p108 = scmp.ne.s32.totalorder %s94, %s95
      %p109 = scmp.eq.s32.totalorder %s21, 2
      %p110 = por %p108, %p109
      %p112 = scmp.ne.s32.totalorder %s95, %s111
      %p113 = scmp.eq.s32.totalorder %s21, 0
      %p114 = por %p112, %p113
      %s115 = ssub.s32 %s22, %s34
      %s116 = ssub.s32 %s23, %s30
      %s117 = sor.u32 %s115, %s116
      %p118 = scmp.eq.s32.totalorder %s117, 0
      %s120 = sadd.s32 %s119, 1
      %s121 = scalar_select %p118, %s119, %s120
      %p124 = pneg %p118
      %p125 = scmp.eq.s32.totalorder %s15, 2
      %p126 = por %p124, %p125
      %p127 = scmp.ne.s32.totalorder %s119, %s122
      %p128 = scmp.eq.s32.totalorder %s15, 0
      %p129 = por %p127, %p128
      %p130 = scmp.ne.s32.totalorder %s119, %s122
      %p131 = scmp.eq.s32.totalorder %s20, 2
      %p132 = por %p130, %p131
      %p133 = scmp.ne.s32.totalorder %s122, %s123
      %p134 = scmp.eq.s32.totalorder %s20, 0
      %p135 = por %p133, %p134
      %p136 = scmp.ne.s32.totalorder %s122, %s123
      %p137 = scmp.eq.s32.totalorder %s21, 2
      %p138 = por %p136, %p137
      %p140 = scmp.ne.s32.totalorder %s123, %s139
      %p141 = scmp.eq.s32.totalorder %s21, 0
      %p142 = por %p140, %p141
      %p143 = scmp.le.s32.totalorder 1, %s15
      %p144 = scmp.lt.s32.totalorder %s15, 4
      %p145 = pnand %p143, %p144
      %p146 = pneg %p145
      // Predicated region
      $region9: #{tpu_custom_call.1} parent=5 // pred_check
        _
      $region10: #{tpu_custom_call.1} parent=5 // pred_check_branch
        %148 = sbr.rel (%p145) target = $region12
      $region11: #{tpu_custom_call.1} parent=5 // pred_region
        %s149 = ssub.s32 %s15, 1
        // Predicated region
        $region13: #{tpu_custom_call.1} parent=11 // pred_check
          %p150 = pneg %p81
        $region14: #{tpu_custom_call.1} parent=11 // pred_check_branch
          %152 = sbr.rel (%p150) target = $region16
        $region15: #{tpu_custom_call.1} parent=11 // pred_region
          %p153 = scmp.lt.s32.totalorder %s25, 0
          %s154 = scalar_select %p153, %s25, 0
          %s155 = scalar_lea.vmem %s1, %s154
        $region16: #{tpu_custom_call.1} parent=11 // pred_fallthru
          _
        // Predicated region
        $region17: #{tpu_custom_call.1} parent=11 // pred_check
          %p156 = pneg %p107
        $region18: #{tpu_custom_call.1} parent=11 // pred_check_branch
          %158 = sbr.rel (%p156) target = $region20
        $region19: #{tpu_custom_call.1} parent=11 // pred_region
          %p159 = scmp.lt.s32.totalorder %s25, 0
          %s160 = scalar_select %p159, %s25, 0
          %s161 = scalar_lea.vmem %s2, %s160
        $region20: #{tpu_custom_call.1} parent=11 // pred_fallthru
          _
      $region12: #{tpu_custom_call.1} parent=5 // pred_fallthru
        _
      %p162 = scmp.lt.s32.totalorder %s15, 3
      // Predicated region
      $region21: #{tpu_custom_call.1} parent=5 // pred_check
        %p163 = pneg %p162
      $region22: #{tpu_custom_call.1} parent=5 // pred_check_branch
        %165 = sbr.rel (%p163) target = $region24
      $region23: #{tpu_custom_call.1} parent=5 // pred_region
        // Predicated region
        $region25: #{tpu_custom_call.1} parent=23 // pred_check
          %p166 = pneg %p49
        $region26: #{tpu_custom_call.1} parent=23 // pred_check_branch
          %168 = sbr.rel (%p166) target = $region28
        $region27: #{tpu_custom_call.1} parent=23 // pred_region
          %s169 = sand.u32 %s39, 1
          %s170 = scalar_lea.sflag [#allocation3], %s169
          %s171 = sand.u32 %s39, 1
          %s172 = smul.addr %s171, 64
          %s173 = scalar_lea.vmem [#allocation2], %s172
          %s174 = smul.u32 8, %s22
          %s175 = ssub.s32 17, %s174
          %p176 = scmp.lt.s32.totalorder %s175, 8
          %s177 = scalar_select %p176, %s175, 8
          %s178 = smul.u32 128, %s177
          %s180 = ssub.s32 1024, %s178
          %181 = vsyncadd %s170, %s180
          %p182 = scmp.ne.s32.totalorder 0, %s178
          %s183 = sadd.s32 %s23, %s174
          %s184 = smul.addr %s183, 128
          %s185 = scalar_lea.hbm %s0, %s184
          %s186 = smul.u32 8, %s177
          %s187 = sshll.u32 %s173, 4
          %s188 = int_to_ptr.vmem [resolvable:$true] %s187
          %s189 = sshll.u32 %s186, 4
          %193 = dma.hbm_to_vmem [thread:$0]  (%p182), %s185, %s189, %s188, %s170, 128, 128, 8
        $region28: #{tpu_custom_call.1} parent=23 // pred_fallthru
          _
      $region24: #{tpu_custom_call.1} parent=5 // pred_fallthru
        _
      %p194 = scmp.le.s32.totalorder 1, %s15
      %p195 = scmp.lt.s32.totalorder %s15, 4
      %p196 = pnand %p194, %p195
      %p197 = pneg %p196
      // Predicated region
      $region29: #{tpu_custom_call.1} parent=5 // pred_check
        _
      $region30: #{tpu_custom_call.1} parent=5 // pred_check_branch
        %199 = sbr.rel (%p196) target = $region32
      $region31: #{tpu_custom_call.1} parent=5 // pred_region
        %s200 = ssub.s32 %s15, 1
        %s201 = sand.u32 %s42, 1
        %s202 = scalar_lea.sflag [#allocation3], %s201
        %s203 = sand.u32 %s42, 1
        %s204 = smul.addr %s203, 64
        %s205 = scalar_lea.vmem [#allocation2], %s204
        // Predicated region
        $region33: #{tpu_custom_call.1} parent=31 // pred_check
          %p206 = pneg %p55
        $region34: #{tpu_custom_call.1} parent=31 // pred_check_branch
          %208 = sbr.rel (%p206) target = $region36
        $region35: #{tpu_custom_call.1} parent=31 // pred_region
          %209 = dma.done %s202, 1024
        $region36: #{tpu_custom_call.1} parent=31 // pred_fallthru
          _
        %s210 = sand.u32 %s42, 1
        %s211 = scalar_lea.sflag [#allocation3], %s210
        %s212 = sand.u32 %s42, 1
        %s213 = smul.addr %s212, 64
        %s214 = scalar_lea.vmem [#allocation2], %s213
        %p215 = pneg %p55
        %p216 = pneg %p52
        %p217 = scmp.lt.s32.totalorder %s25, 0
        %s218 = scalar_select %p217, %s25, 0
        %s219 = scalar_lea.vmem %s1, %s218
        %p220 = pneg %p81
        %p221 = pneg %p78
        %p222 = scmp.lt.s32.totalorder %s25, 0
        %s223 = scalar_select %p222, %s25, 0
        %s224 = scalar_lea.vmem %s2, %s223
        %p225 = pneg %p107
        %p226 = pneg %p104
        %p227 = pneg %p135
        %p228 = pneg %p132
        %s229 = sand.u32 %s122, 1
        %s230 = scalar_lea.sflag [#allocation4], %s229
        %s231 = sand.u32 %s122, 1
        %s232 = smul.addr %s231, 64
        %s233 = scalar_lea.vmem [#allocation5], %s232
        %s234 = smul.u32 8, %s24
        %s235 = ssub.s32 17, %s234
        %p236 = scmp.lt.s32.totalorder %s235, 8
        %s237 = scalar_select %p236, %s235, 8
        %s238 = smul.u32 128, %s237
        %p239 = scmp.lt.s32.totalorder %s25, 0
        %s240 = scalar_select %p239, %s25, 0
        %s241 = scalar_lea.vmem %s1, %s240
        %p242 = scmp.lt.s32.totalorder %s25, 0
        %s243 = scalar_select %p242, %s25, 0
        %s244 = scalar_lea.vmem %s2, %s243
        %s245 = smul.u32 8, %s24
        %s246 = ssub.s32 17, %s245
        %p247 = scmp.lt.s32.totalorder %s246, 8
        %s248 = scalar_select %p247, %s246, 8
        %s249 = smul.u32 128, %s248
        %v250 = vld [vmem:[%s205] sm:$0xff]
        %v251 = vld [vmem:[%s205 + $0x8] sm:$0xff]
        %v252 = vld [vmem:[%s205 + $0x10] sm:$0xff]
        %v253 = vld [vmem:[%s205 + $0x18] sm:$0xff]
        %v254 = vld [vmem:[%s205 + $0x20] sm:$0xff]
        %v255 = vld [vmem:[%s205 + $0x28] sm:$0xff]
        %v256 = vld [vmem:[%s205 + $0x30] sm:$0xff]
        %v257 = vld [vmem:[%s205 + $0x38] sm:$0xff]
        %v258 = vld [vmem:[%s241] sm:$0x1]
        %v260 = vlaneseq
        %v261 = vshrl.u32 %v260, 7
        %v262 = vsub.s32 0, %v261
        %v263 = vrot.slane %v258, %v262
        %v265 = vsub.f32 %v250, %v263
        %v266 = vsub.f32 %v251, %v263
        %v267 = vsub.f32 %v252, %v263
        %v268 = vsub.f32 %v253, %v263
        %v269 = vsub.f32 %v254, %v263
        %v270 = vsub.f32 %v255, %v263
        %v271 = vsub.f32 %v256, %v263
        %v272 = vsub.f32 %v257, %v263
        %v273 = vld [vmem:[%s244] sm:$0x1]
        %v275 = vlaneseq
        %v276 = vshrl.u32 %v275, 7
        %v277 = vsub.s32 0, %v276
        %v278 = vrot.slane %v273, %v277
        %v280 = vmul.f32 %v265, %v278
        %v281 = vmul.f32 %v266, %v278
        %v282 = vmul.f32 %v267, %v278
        %v283 = vmul.f32 %v268, %v278
        %v284 = vmul.f32 %v269, %v278
        %v285 = vmul.f32 %v270, %v278
        %v286 = vmul.f32 %v271, %v278
        %v287 = vmul.f32 %v272, %v278
        %288 = vst [vmem:[%s233] sm:$0xff] %v280
        %289 = vst [vmem:[%s233 + $0x8] sm:$0xff] %v281
        %290 = vst [vmem:[%s233 + $0x10] sm:$0xff] %v282
        %291 = vst [vmem:[%s233 + $0x18] sm:$0xff] %v283
        %292 = vst [vmem:[%s233 + $0x20] sm:$0xff] %v284
        %293 = vst [vmem:[%s233 + $0x28] sm:$0xff] %v285
        %294 = vst [vmem:[%s233 + $0x30] sm:$0xff] %v286
        %295 = vst [vmem:[%s233 + $0x38] sm:$0xff] %v287
        %s296 = sand.u32 %s122, 1
        %s297 = scalar_lea.sflag [#allocation4], %s296
        %s298 = sand.u32 %s122, 1
        %s299 = smul.addr %s298, 64
        %s300 = scalar_lea.vmem [#allocation5], %s299
        // Predicated region
        $region37: #{tpu_custom_call.1} parent=31 // pred_check
          %p301 = pneg %p132
        $region38: #{tpu_custom_call.1} parent=31 // pred_check_branch
          %303 = sbr.rel (%p301) target = $region40
        $region39: #{tpu_custom_call.1} parent=31 // pred_region
          %s304 = smul.u32 8, %s24
          %s305 = ssub.s32 17, %s304
          %p306 = scmp.lt.s32.totalorder %s305, 8
          %s307 = scalar_select %p306, %s305, 8
          %s308 = smul.u32 128, %s307
          %s310 = ssub.s32 1024, %s308
          %311 = vsyncadd %s297, %s310
          %p312 = scmp.ne.s32.totalorder 0, %s308
          %s313 = sadd.s32 %s25, %s304
          %s314 = smul.addr %s313, 128
          %s315 = scalar_lea.hbm %s3, %s314
          %s316 = smul.u32 8, %s307
          %s317 = sshll.u32 %s300, 4
          %s318 = int_to_ptr.vmem [resolvable:$true] %s317
          %s319 = sshll.u32 %s316, 4
          %323 = dma.vmem_to_hbm [thread:$0]  (%p312), %s318, %s319, %s315, %s297, 128, 128, 8
        $region40: #{tpu_custom_call.1} parent=31 // pred_fallthru
          _
      $region32: #{tpu_custom_call.1} parent=5 // pred_fallthru
        _
      %p324 = scmp.le.s32.totalorder 2, %s15
      // Predicated region
      $region41: #{tpu_custom_call.1} parent=5 // pred_check
        %p325 = pneg %p324
      $region42: #{tpu_custom_call.1} parent=5 // pred_check_branch
        %327 = sbr.rel (%p325) target = $region44
      $region43: #{tpu_custom_call.1} parent=5 // pred_region
        %s328 = ssub.s32 %s15, 2
        // Predicated region
        $region45: #{tpu_custom_call.1} parent=43 // pred_check
          %p329 = pneg %p138
        $region46: #{tpu_custom_call.1} parent=43 // pred_check_branch
          %331 = sbr.rel (%p329) target = $region48
        $region47: #{tpu_custom_call.1} parent=43 // pred_region
          %s332 = sand.u32 %s123, 1
          %s333 = scalar_lea.sflag [#allocation4], %s332
          %s334 = sand.u32 %s123, 1
          %s335 = smul.addr %s334, 64
          %s336 = scalar_lea.vmem [#allocation5], %s335
          %337 = dma.done %s333, 1024
        $region48: #{tpu_custom_call.1} parent=43 // pred_fallthru
          _
      $region44: #{tpu_custom_call.1} parent=5 // pred_fallthru
        _
    $region6: #{tpu_custom_call.1} parent=1 // loop_footer
      %s19 = sadd.s32 1, %s15
    $region7: #{tpu_custom_call.1} parent=1 // loop_footer_branch
      %14 = sbr.rel target = $region3
    $region8: #{tpu_custom_call.1} parent=1 // loop_exit
      _
    %338 = vsyncpa [#allocation3], 1
    %s339 = scalar_lea.sflag [#allocation3], 1
    %340 = vsyncpa %s339, 1
    %341 = vsyncpa [#allocation4], 1
    %s342 = scalar_lea.sflag [#allocation4], 1
    %343 = vsyncpa %s342, 1

</llo_original>
